<compile_context>
chip_gen: v7x
topology: tpu7x:2x2x1
jax: 0.10.0
libtpu: 0.0.40
codegen_flags: <defaults>
</compile_context>

<pallas_src>
import functools

import jax
import jax.numpy as jnp
from jax.experimental import pallas as pl
from jax.experimental.pallas import tpu as pltpu

LANE = 128          # TPU lane width (last-dim vector width)
_MB = 1 << 20


def _dqn_kernel(xT_ref, w1_ref, b1_ref, w2_ref, b2_ref, w3_ref, b3_ref, outT_ref,
                *, mxu_bf16):
    """One batch tile of the MLP in transposed (features, batch) layout.

    Per-block shapes:
      xT  : (D_in, TB)   batch on the lane axis  -> lane-dense input DMA
      wk  : (out_k, in_k) torch (out, in) layout, VMEM-resident across the grid
      bk  : (out_k, 1)
      outT: (A, TB)      batch on the lane axis  -> lane-dense output store
    """
    xT = xT_ref[...]
    w1 = w1_ref[...]
    d_in = w1.shape[1]

    # ---- Layer 1: Linear + ReLU -------------------------------------------
    if d_in <= 8:
        # Tiny-K first layer: an MXU pass at <=8/128 K-utilization is wasted,
        # so unroll it as broadcast multiply-adds on the (underused) VPU.
        h = w1[:, 0:1] * xT[0:1, :] + b1_ref[...]            # (H1,1)*(1,TB)+(H1,1)
        for k in range(1, d_in):
            h = h + w1[:, k:k + 1] * xT[k:k + 1, :]
    else:
        h = jnp.dot(w1, xT, preferred_element_type=jnp.float32) + b1_ref[...]
    h = jnp.maximum(h, 0.0)

    # ---- Layers 2 & 3: MXU matmuls with f32 accumulation -------------------
    mm_dtype = jnp.bfloat16 if mxu_bf16 else jnp.float32
    h = jnp.dot(w2_ref[...].astype(mm_dtype), h.astype(mm_dtype),
                preferred_element_type=jnp.float32) + b2_ref[...]
    h = jnp.maximum(h, 0.0)

    out = jnp.dot(w3_ref[...].astype(mm_dtype), h.astype(mm_dtype),
                  preferred_element_type=jnp.float32) + b3_ref[...]
    outT_ref[...] = out.astype(outT_ref.dtype)


def dqn_forward(x, params, *, block_b=16384, mxu_bf16=False, return_transposed=False):
    """DQN forward pass with a batch-tiled pallas_call.

    x: (B, input_dims) float32
    params: dict with w1..w3 in torch (out, in) layout and b1..b3 as (out, 1).
    block_b: cap on the batch-tile (lane) size; the wrapper picks the fewest
             grid steps that respect it (but keeps >= 2 steps when the batch
             is big enough so v7x's two TensorCores both get work).
    mxu_bf16: cast layer-2/3 matmul inputs to bf16 (f32 accumulation kept).
    return_transposed: return the raw (n_actions, B) slab (skips one transpose).
    """
    w1, b1 = params["w1"], params["b1"]
    w2, b2 = params["w2"], params["b2"]
    w3, b3 = params["w3"], params["b3"]

    B, d_in = x.shape
    h1 = w1.shape[0]
    h2 = w2.shape[0]
    a = w3.shape[0]

    # ---- batch tiling -------------------------------------------------------
    cap = max(LANE, (int(block_b) // LANE) * LANE)
    min_steps = 2 if B >= 2 * LANE else 1          # let both v7x TCs work
    tb = min(pl.cdiv(pl.cdiv(B, min_steps), LANE) * LANE, cap)
    steps = pl.cdiv(B, tb)
    if steps == 1:
        tb = B          # single full-extent block: always a legal block shape
    grid = (steps,)

    # ---- input in transposed layout, no padding / no zeros materialization --
    if d_in == 1:
        xT = x.reshape(1, B)        # metadata-only reshape, no extra HBM pass
    else:
        xT = x.T                    # needed for the lane-dense transposed layout

    # ---- VMEM budget: stay inside v5e's 16 MiB default scoped VMEM; never
    #      push toward 128 MiB (v7x only has 64 MiB physical per TensorCore).
    est_bytes = 4 * tb * (2 * d_in + 2 * a + 3 * max(h1, h2)) \
        + 4 * (h1 * d_in + h2 * h1 + a * h2 + h1 + h2 + a)
    vmem_limit = None
    if est_bytes > 14 * _MB:
        vmem_limit = int(min(2 * est_bytes, 64 * _MB))

    # Weights/biases: constant index_map -> DMA'd once, resident in VMEM.
    const = lambda shape: pl.BlockSpec(shape, lambda i: (0, 0))

    outT = pl.pallas_call(
        functools.partial(_dqn_kernel, mxu_bf16=mxu_bf16),
        out_shape=jax.ShapeDtypeStruct((a, B), jnp.float32),
        grid=grid,
        in_specs=[
            pl.BlockSpec((d_in, tb), lambda i: (0, i)),   # pipelined x^T tile
            const((h1, d_in)), const((h1, 1)),
            const((h2, h1)), const((h2, 1)),
            const((a, h2)), const((a, 1)),
        ],
        out_specs=pl.BlockSpec((a, tb), lambda i: (0, i)),
        compiler_params=pltpu.CompilerParams(
            dimension_semantics=("parallel",),            # megacore-shard on v7x
            vmem_limit_bytes=vmem_limit,
        ),
    )(xT, w1, b1, w2, b2, w3, b3)

    if return_transposed:
        return outT                 # (n_actions, B): use argmax(axis=0) downstream
    return outT.T                   # (B, n_actions), torch layout


def init_dqn_params(key, input_dims=1, n_actions=4, params_list=(32, 32)):
    """Deterministic init mimicking nn.Linear's default (uniform +/- 1/sqrt(fan_in)).

    Stored in torch layout: weight (out, in), bias (out, 1).
    """
    dims = [input_dims] + list(params_list) + [n_actions]
    params = {}
    for i in range(len(dims) - 1):
        fan_in, fan_out = dims[i], dims[i + 1]
        key, kw, kb = jax.random.split(key, 3)
        bound = 1.0 / (fan_in ** 0.5)
        params[f"w{i+1}"] = jax.random.uniform(
            kw, (fan_out, fan_in), jnp.float32, minval=-bound, maxval=bound)
        params[f"b{i+1}"] = jax.random.uniform(
            kb, (fan_out, 1), jnp.float32, minval=-bound, maxval=bound)
    return params


def dqn_forward_ref(x, params):
    """Pure-JAX reference (matches torch: y = x @ W.T + b)."""
    h = jnp.maximum(x @ params["w1"].T + params["b1"].T, 0.0)
    h = jnp.maximum(h @ params["w2"].T + params["b2"].T, 0.0)
    return h @ params["w3"].T + params["b3"].T


if __name__ == "__main__":
    key = jax.random.PRNGKey(0)
    key, kx1, kx2, kp1, kp2 = jax.random.split(key, 5)

    # --- Case 1: module defaults (input_dims=1, n_actions=4, hidden 32,32) ---
    #     batch=300: ragged vs the 128-lane tile and >=2 grid steps.
    params = init_dqn_params(kp1, input_dims=1, n_actions=4, params_list=(32, 32))
    x = jax.random.normal(kx1, (300, 1), dtype=jnp.float32)

    out = jax.block_until_ready(dqn_forward(x, params))
    ref = dqn_forward_ref(x, params)
    assert out.shape == (300, 4), out.shape
    assert jnp.allclose(out, ref, atol=1e-4, rtol=1e-4), "f32 path mismatch"

    # bf16 MXU-input path (f32 accumulation) needs a looser tolerance.
    out_bf16 = jax.block_until_ready(dqn_forward(x, params, mxu_bf16=True))
    assert jnp.allclose(out_bf16, ref, atol=2e-2, rtol=2e-2), "bf16 path mismatch"

    # --- Case 2: wider input (exercises the MXU layer-1 path + single block) -
    params2 = init_dqn_params(kp2, input_dims=16, n_actions=4, params_list=(32, 32))
    x2 = jax.random.normal(kx2, (64, 16), dtype=jnp.float32)
    out2 = jax.block_until_ready(dqn_forward(x2, params2))
    ref2 = dqn_forward_ref(x2, params2)
    assert out2.shape == (64, 4), out2.shape
    assert jnp.allclose(out2, ref2, atol=1e-4, rtol=1e-4), "wide-input mismatch"

    print("KERNEL_OK")
</pallas_src>

<mosaic_0001>
module attributes {stable_mosaic.version = 11 : i64} {
  func.func @_dqn_kernel(%arg0: i32, %arg1: memref<1x256xf32, #tpu.memory_space<vmem>>, %arg2: memref<32x1xf32, #tpu.memory_space<vmem>>, %arg3: memref<32x1xf32, #tpu.memory_space<vmem>>, %arg4: memref<32x32xf32, #tpu.memory_space<vmem>>, %arg5: memref<32x1xf32, #tpu.memory_space<vmem>>, %arg6: memref<4x32xf32, #tpu.memory_space<vmem>>, %arg7: memref<4x1xf32, #tpu.memory_space<vmem>>, %arg8: memref<4x256xf32, #tpu.memory_space<vmem>>) attributes {dimension_semantics = [#tpu.dimension_semantics<parallel>], iteration_bounds = array<i64: 2>, scalar_prefetch = 0 : i64, scratch_operands = 0 : i64, tpu.core_type = #tpu.core_type<tc>, window_params = [{transform_indices = @transform_0, window_bounds = array<i64: 1, 256>}, {pipeline_mode = #tpu.pipeline_mode<synchronous>, transform_indices = @transform_1, window_bounds = array<i64: 32, 1>}, {pipeline_mode = #tpu.pipeline_mode<synchronous>, transform_indices = @transform_2, window_bounds = array<i64: 32, 1>}, {pipeline_mode = #tpu.pipeline_mode<synchronous>, transform_indices = @transform_3, window_bounds = array<i64: 32, 32>}, {pipeline_mode = #tpu.pipeline_mode<synchronous>, transform_indices = @transform_4, window_bounds = array<i64: 32, 1>}, {pipeline_mode = #tpu.pipeline_mode<synchronous>, transform_indices = @transform_5, window_bounds = array<i64: 4, 32>}, {pipeline_mode = #tpu.pipeline_mode<synchronous>, transform_indices = @transform_6, window_bounds = array<i64: 4, 1>}, {transform_indices = @transform_7, window_bounds = array<i64: 4, 256>}]} {
    %c0 = arith.constant 0 : index
    %c0_0 = arith.constant 0 : index
    %0 = vector.load %arg1[%c0, %c0_0] : memref<1x256xf32, #tpu.memory_space<vmem>>, vector<1x256xf32>
    %c0_1 = arith.constant 0 : index
    %c0_2 = arith.constant 0 : index
    %1 = vector.load %arg2[%c0_1, %c0_2] : memref<32x1xf32, #tpu.memory_space<vmem>>, vector<32x1xf32>
    %2 = vector.broadcast %1 : vector<32x1xf32> to vector<32x256xf32>
    %3 = vector.broadcast %0 : vector<1x256xf32> to vector<32x256xf32>
    %4 = arith.mulf %2, %3 : vector<32x256xf32>
    %c0_3 = arith.constant 0 : index
    %c0_4 = arith.constant 0 : index
    %5 = vector.load %arg3[%c0_3, %c0_4] : memref<32x1xf32, #tpu.memory_space<vmem>>, vector<32x1xf32>
    %6 = vector.broadcast %5 : vector<32x1xf32> to vector<32x256xf32>
    %7 = arith.addf %4, %6 : vector<32x256xf32>
    %cst = arith.constant 0.000000e+00 : f32
    %8 = vector.broadcast %cst : f32 to vector<32x256xf32>
    %9 = arith.maximumf %7, %8 : vector<32x256xf32>
    %c0_5 = arith.constant 0 : index
    %c0_6 = arith.constant 0 : index
    %10 = vector.load %arg4[%c0_5, %c0_6] : memref<32x32xf32, #tpu.memory_space<vmem>>, vector<32x32xf32>
    %cst_7 = arith.constant dense<0.000000e+00> : vector<32x256xf32>
    %11 = tpu.matmul %10, %9, %cst_7 {dimension_numbers = #tpu.dot_dimension_numbers<[1], [0], [0], [1], [0, 0, 1, 1], [], []>} : vector<32x32xf32>, vector<32x256xf32>, vector<32x256xf32> -> vector<32x256xf32>
    %c0_8 = arith.constant 0 : index
    %c0_9 = arith.constant 0 : index
    %12 = vector.load %arg5[%c0_8, %c0_9] : memref<32x1xf32, #tpu.memory_space<vmem>>, vector<32x1xf32>
    %13 = vector.broadcast %12 : vector<32x1xf32> to vector<32x256xf32>
    %14 = arith.addf %11, %13 : vector<32x256xf32>
    %cst_10 = arith.constant 0.000000e+00 : f32
    %15 = vector.broadcast %cst_10 : f32 to vector<32x256xf32>
    %16 = arith.maximumf %14, %15 : vector<32x256xf32>
    %c0_11 = arith.constant 0 : index
    %c0_12 = arith.constant 0 : index
    %17 = vector.load %arg6[%c0_11, %c0_12] : memref<4x32xf32, #tpu.memory_space<vmem>>, vector<4x32xf32>
    %cst_13 = arith.constant dense<0.000000e+00> : vector<4x256xf32>
    %18 = tpu.matmul %17, %16, %cst_13 {dimension_numbers = #tpu.dot_dimension_numbers<[1], [0], [0], [1], [0, 0, 1, 1], [], []>} : vector<4x32xf32>, vector<32x256xf32>, vector<4x256xf32> -> vector<4x256xf32>
    %c0_14 = arith.constant 0 : index
    %c0_15 = arith.constant 0 : index
    %19 = vector.load %arg7[%c0_14, %c0_15] : memref<4x1xf32, #tpu.memory_space<vmem>>, vector<4x1xf32>
    %20 = vector.broadcast %19 : vector<4x1xf32> to vector<4x256xf32>
    %21 = arith.addf %18, %20 : vector<4x256xf32>
    %c0_16 = arith.constant 0 : index
    %c0_17 = arith.constant 0 : index
    %22 = vector.load %arg8[%c0_16, %c0_17] : memref<4x256xf32, #tpu.memory_space<vmem>>, vector<4x256xf32>
    tpu.vector_store %arg8[%c0_16, %c0_17], %21 {strides = array<i32>} : memref<4x256xf32, #tpu.memory_space<vmem>>, vector<4x256xf32>,
    return
  }
  func.func @transform_0(%arg0: i32) -> (i32, i32) {
    %c0_i32 = arith.constant 0 : i32
    %c0_i32_0 = arith.constant 0 : i32
    return %c0_i32, %arg0 : i32, i32
  }
  func.func @transform_1(%arg0: i32) -> (i32, i32) {
    %c0_i32 = arith.constant 0 : i32
    %c0_i32_0 = arith.constant 0 : i32
    %c0_i32_1 = arith.constant 0 : i32
    return %c0_i32, %c0_i32_0 : i32, i32
  }
  func.func @transform_2(%arg0: i32) -> (i32, i32) {
    %c0_i32 = arith.constant 0 : i32
    %c0_i32_0 = arith.constant 0 : i32
    %c0_i32_1 = arith.constant 0 : i32
    return %c0_i32, %c0_i32_0 : i32, i32
  }
  func.func @transform_3(%arg0: i32) -> (i32, i32) {
    %c0_i32 = arith.constant 0 : i32
    %c0_i32_0 = arith.constant 0 : i32
    %c0_i32_1 = arith.constant 0 : i32
    return %c0_i32, %c0_i32_0 : i32, i32
  }
  func.func @transform_4(%arg0: i32) -> (i32, i32) {
    %c0_i32 = arith.constant 0 : i32
    %c0_i32_0 = arith.constant 0 : i32
    %c0_i32_1 = arith.constant 0 : i32
    return %c0_i32, %c0_i32_0 : i32, i32
  }
  func.func @transform_5(%arg0: i32) -> (i32, i32) {
    %c0_i32 = arith.constant 0 : i32
    %c0_i32_0 = arith.constant 0 : i32
    %c0_i32_1 = arith.constant 0 : i32
    return %c0_i32, %c0_i32_0 : i32, i32
  }
  func.func @transform_6(%arg0: i32) -> (i32, i32) {
    %c0_i32 = arith.constant 0 : i32
    %c0_i32_0 = arith.constant 0 : i32
    %c0_i32_1 = arith.constant 0 : i32
    return %c0_i32, %c0_i32_0 : i32, i32
  }
  func.func @transform_7(%arg0: i32) -> (i32, i32) {
    %c0_i32 = arith.constant 0 : i32
    %c0_i32_0 = arith.constant 0 : i32
    return %c0_i32, %arg0 : i32, i32
  }
}

</mosaic_0001>

<llo_original>
// kernel: tpu_custom_call.1
$region0: #{tpu_custom_call.1}
  #allocation0 [shape = 'u32[]', space=smem, size = 0x4, offset = 0x4, fixed_abs, tag = 'smem constant byte address 0x4 - core index']
  #allocation1 [shape = 'u32[144,128]{1,0:T(1,128)}', space=vmem, size = 0x12000, scoped, tag = 'internal scratch']
  %s0 = inlined_call_operand.vmem [shape: f32[1,300], index: 0, kind: input, shape index: {}]
  %s1 = inlined_call_operand.vmem [shape: f32[32,1], index: 1, kind: input, shape index: {}]
  %s2 = inlined_call_operand.vmem [shape: f32[32,1], index: 2, kind: input, shape index: {}]
  %s3 = inlined_call_operand.vmem [shape: f32[32,32], index: 3, kind: input, shape index: {}]
  %s4 = inlined_call_operand.vmem [shape: f32[32,1], index: 4, kind: input, shape index: {}]
  %s5 = inlined_call_operand.vmem [shape: f32[4,32], index: 5, kind: input, shape index: {}]
  %s6 = inlined_call_operand.vmem [shape: f32[4,1], index: 6, kind: input, shape index: {}]
  %s7 = inlined_call_operand.hbm [shape: f32[4,300], index: 7, kind: output, shape index: {}]
  %s8 = sld [smem:[#allocation0]]
  $region61: #{tpu_custom_call.1} parent=0
    _
  %s10 = ssub.s32 1, %s8
  %s11 = scalar_select 0, %s10, %s8
  $region1: #{tpu_custom_call.1} parent=0
    #allocation2 [shape = 'u8[8192]{0}', space=vmem, size = 0x2000, scoped, tag = 'output window, operand 0']
    #allocation3 [shape = 's32[2]{0}', space=sflag, size = 0x8, scoped, tag = 'scoped memory for tpu_custom_call.1']
    %12 = vsyncpa [#allocation3], 0
    %s13 = scalar_lea.sflag [#allocation3], 1
    %14 = vsyncpa %s13, 0
    loop: start=0, step=1, limit=4
    $region2: #{tpu_custom_call.1} parent=1 // loop_pre_header
      _
    $region3: #{tpu_custom_call.1} parent=1 // loop_header
      %s16 = sphi 0, %s20
      %p17 = scmp.ge.s32.totalorder %s16, 4
      %s26 = sphi 0, %s28
      %s29 = sphi 0, %s26
      %s30 = sphi 0, %s29
      %s46 = sphi 0, %s30
      %s50 = sphi 0, %s50
      %s52 = sphi 0, %s50
      %s53 = sphi 0, %s52
      %s67 = sphi 0, %s53
      %s71 = sphi 0, %s71
      %s73 = sphi 0, %s71
      %s74 = sphi 0, %s73
      %s88 = sphi 0, %s74
      %s92 = sphi 0, %s92
      %s94 = sphi 0, %s92
      %s95 = sphi 0, %s94
      %s109 = sphi 0, %s95
      %s113 = sphi 0, %s113
      %s115 = sphi 0, %s113
      %s116 = sphi 0, %s115
      %s130 = sphi 0, %s116
      %s134 = sphi 0, %s134
      %s136 = sphi 0, %s134
      %s137 = sphi 0, %s136
      %s151 = sphi 0, %s137
      %s155 = sphi 0, %s155
      %s157 = sphi 0, %s155
      %s158 = sphi 0, %s157
      %s172 = sphi 0, %s158
      %s178 = sphi 0, %s180
      %s181 = sphi 0, %s178
      %s182 = sphi 0, %s181
      %s198 = sphi 0, %s182
    $region4: #{tpu_custom_call.1} parent=1 // loop_header_branch
      %19 = sbr.rel (%p17) target = $region8
    $region5: #{tpu_custom_call.1} parent=1 // loop_body
      %s21 = ssub.s32 %s16, 1
      %s22 = ssub.s32 %s16, 2
      %s23 = sadd.s32 %s16, 1
      %s24 = ssub.s32 %s16, %s23
      %p25 = scmp.eq.s32.totalorder %s24, 0
      %s27 = sadd.s32 %s26, 1
      %s28 = scalar_select %p25, %s26, %s27
      %p31 = pneg %p25
      %p32 = scmp.eq.s32.totalorder %s16, 1
      %p33 = por %p31, %p32
      %p34 = scmp.ne.s32.totalorder %s26, %s29
      %p35 = scmp.eq.s32.totalorder %s16, 0
      %p36 = por %p34, %p35
      %p37 = scmp.ne.s32.totalorder %s26, %s29
      %p38 = scmp.eq.s32.totalorder %s21, 1
      %p39 = por %p37, %p38
      %p40 = scmp.ne.s32.totalorder %s29, %s30
      %p41 = scmp.eq.s32.totalorder %s21, 0
      %p42 = por %p40, %p41
      %p43 = scmp.ne.s32.totalorder %s29, %s30
      %p44 = scmp.eq.s32.totalorder %s22, 1
      %p45 = por %p43, %p44
      %p47 = scmp.ne.s32.totalorder %s30, %s46
      %p48 = scmp.eq.s32.totalorder %s22, 0
      %p49 = por %p47, %p48
      %s51 = sadd.s32 %s50, 1
      %p54 = scmp.eq.s32.totalorder %s16, 1
      %p55 = scmp.ne.s32.totalorder %s50, %s52
      %p56 = scmp.eq.s32.totalorder %s16, 0
      %p57 = por %p55, %p56
      %p58 = scmp.ne.s32.totalorder %s50, %s52
      %p59 = scmp.eq.s32.totalorder %s21, 1
      %p60 = por %p58, %p59
      %p61 = scmp.ne.s32.totalorder %s52, %s53
      %p62 = scmp.eq.s32.totalorder %s21, 0
      %p63 = por %p61, %p62
      %p64 = scmp.ne.s32.totalorder %s52, %s53
      %p65 = scmp.eq.s32.totalorder %s22, 1
      %p66 = por %p64, %p65
      %p68 = scmp.ne.s32.totalorder %s53, %s67
      %p69 = scmp.eq.s32.totalorder %s22, 0
      %p70 = por %p68, %p69
      %s72 = sadd.s32 %s71, 1
      %p75 = scmp.eq.s32.totalorder %s16, 1
      %p76 = scmp.ne.s32.totalorder %s71, %s73
      %p77 = scmp.eq.s32.totalorder %s16, 0
      %p78 = por %p76, %p77
      %p79 = scmp.ne.s32.totalorder %s71, %s73
      %p80 = scmp.eq.s32.totalorder %s21, 1
      %p81 = por %p79, %p80
      %p82 = scmp.ne.s32.totalorder %s73, %s74
      %p83 = scmp.eq.s32.totalorder %s21, 0
      %p84 = por %p82, %p83
      %p85 = scmp.ne.s32.totalorder %s73, %s74
      %p86 = scmp.eq.s32.totalorder %s22, 1
      %p87 = por %p85, %p86
      %p89 = scmp.ne.s32.totalorder %s74, %s88
      %p90 = scmp.eq.s32.totalorder %s22, 0
      %p91 = por %p89, %p90
      %s93 = sadd.s32 %s92, 1
      %p96 = scmp.eq.s32.totalorder %s16, 1
      %p97 = scmp.ne.s32.totalorder %s92, %s94
      %p98 = scmp.eq.s32.totalorder %s16, 0
      %p99 = por %p97, %p98
      %p100 = scmp.ne.s32.totalorder %s92, %s94
      %p101 = scmp.eq.s32.totalorder %s21, 1
      %p102 = por %p100, %p101
      %p103 = scmp.ne.s32.totalorder %s94, %s95
      %p104 = scmp.eq.s32.totalorder %s21, 0
      %p105 = por %p103, %p104
      %p106 = scmp.ne.s32.totalorder %s94, %s95
      %p107 = scmp.eq.s32.totalorder %s22, 1
      %p108 = por %p106, %p107
      %p110 = scmp.ne.s32.totalorder %s95, %s109
      %p111 = scmp.eq.s32.totalorder %s22, 0
      %p112 = por %p110, %p111
      %s114 = sadd.s32 %s113, 1
      %p117 = scmp.eq.s32.totalorder %s16, 1
      %p118 = scmp.ne.s32.totalorder %s113, %s115
      %p119 = scmp.eq.s32.totalorder %s16, 0
      %p120 = por %p118, %p119
      %p121 = scmp.ne.s32.totalorder %s113, %s115
      %p122 = scmp.eq.s32.totalorder %s21, 1
      %p123 = por %p121, %p122
      %p124 = scmp.ne.s32.totalorder %s115, %s116
      %p125 = scmp.eq.s32.totalorder %s21, 0
      %p126 = por %p124, %p125
      %p127 = scmp.ne.s32.totalorder %s115, %s116
      %p128 = scmp.eq.s32.totalorder %s22, 1
      %p129 = por %p127, %p128
      %p131 = scmp.ne.s32.totalorder %s116, %s130
      %p132 = scmp.eq.s32.totalorder %s22, 0
      %p133 = por %p131, %p132
      %s135 = sadd.s32 %s134, 1
      %p138 = scmp.eq.s32.totalorder %s16, 1
      %p139 = scmp.ne.s32.totalorder %s134, %s136
      %p140 = scmp.eq.s32.totalorder %s16, 0
      %p141 = por %p139, %p140
      %p142 = scmp.ne.s32.totalorder %s134, %s136
      %p143 = scmp.eq.s32.totalorder %s21, 1
      %p144 = por %p142, %p143
      %p145 = scmp.ne.s32.totalorder %s136, %s137
      %p146 = scmp.eq.s32.totalorder %s21, 0
      %p147 = por %p145, %p146
      %p148 = scmp.ne.s32.totalorder %s136, %s137
      %p149 = scmp.eq.s32.totalorder %s22, 1
      %p150 = por %p148, %p149
      %p152 = scmp.ne.s32.totalorder %s137, %s151
      %p153 = scmp.eq.s32.totalorder %s22, 0
      %p154 = por %p152, %p153
      %s156 = sadd.s32 %s155, 1
      %p159 = scmp.eq.s32.totalorder %s16, 1
      %p160 = scmp.ne.s32.totalorder %s155, %s157
      %p161 = scmp.eq.s32.totalorder %s16, 0
      %p162 = por %p160, %p161
      %p163 = scmp.ne.s32.totalorder %s155, %s157
      %p164 = scmp.eq.s32.totalorder %s21, 1
      %p165 = por %p163, %p164
      %p166 = scmp.ne.s32.totalorder %s157, %s158
      %p167 = scmp.eq.s32.totalorder %s21, 0
      %p168 = por %p166, %p167
      %p169 = scmp.ne.s32.totalorder %s157, %s158
      %p170 = scmp.eq.s32.totalorder %s22, 1
      %p171 = por %p169, %p170
      %p173 = scmp.ne.s32.totalorder %s158, %s172
      %p174 = scmp.eq.s32.totalorder %s22, 0
      %p175 = por %p173, %p174
      %s176 = ssub.s32 %s16, %s23
      %p177 = scmp.eq.s32.totalorder %s176, 0
      %s179 = sadd.s32 %s178, 1
      %s180 = scalar_select %p177, %s178, %s179
      %p183 = pneg %p177
      %p184 = scmp.eq.s32.totalorder %s16, 1
      %p185 = por %p183, %p184
      %p186 = scmp.ne.s32.totalorder %s178, %s181
      %p187 = scmp.eq.s32.totalorder %s16, 0
      %p188 = por %p186, %p187
      %p189 = scmp.ne.s32.totalorder %s178, %s181
      %p190 = scmp.eq.s32.totalorder %s21, 1
      %p191 = por %p189, %p190
      %p192 = scmp.ne.s32.totalorder %s181, %s182
      %p193 = scmp.eq.s32.totalorder %s21, 0
      %p194 = por %p192, %p193
      %p195 = scmp.ne.s32.totalorder %s181, %s182
      %p196 = scmp.eq.s32.totalorder %s22, 1
      %p197 = por %p195, %p196
      %p199 = scmp.ne.s32.totalorder %s182, %s198
      %p200 = scmp.eq.s32.totalorder %s22, 0
      %p201 = por %p199, %p200
      %p202 = scmp.le.s32.totalorder 1, %s16
      %p203 = scmp.lt.s32.totalorder %s16, 3
      %p204 = pnand %p202, %p203
      %p205 = pneg %p204
      // Predicated region
      $region9: #{tpu_custom_call.1} parent=5 // pred_check
        _
      $region10: #{tpu_custom_call.1} parent=5 // pred_check_branch
        %207 = sbr.rel (%p204) target = $region12
      $region11: #{tpu_custom_call.1} parent=5 // pred_region
        %s208 = ssub.s32 %s16, 1
        // Predicated region
        $region13: #{tpu_custom_call.1} parent=11 // pred_check
          %p209 = pneg %p63
        $region14: #{tpu_custom_call.1} parent=11 // pred_check_branch
          %211 = sbr.rel (%p209) target = $region16
        $region15: #{tpu_custom_call.1} parent=11 // pred_region
          _
        $region16: #{tpu_custom_call.1} parent=11 // pred_fallthru
          _
        // Predicated region
        $region17: #{tpu_custom_call.1} parent=11 // pred_check
          %p212 = pneg %p84
        $region18: #{tpu_custom_call.1} parent=11 // pred_check_branch
          %214 = sbr.rel (%p212) target = $region20
        $region19: #{tpu_custom_call.1} parent=11 // pred_region
          _
        $region20: #{tpu_custom_call.1} parent=11 // pred_fallthru
          _
        // Predicated region
        $region21: #{tpu_custom_call.1} parent=11 // pred_check
          %p215 = pneg %p105
        $region22: #{tpu_custom_call.1} parent=11 // pred_check_branch
          %217 = sbr.rel (%p215) target = $region24
        $region23: #{tpu_custom_call.1} parent=11 // pred_region
          _
        $region24: #{tpu_custom_call.1} parent=11 // pred_fallthru
          _
        // Predicated region
        $region25: #{tpu_custom_call.1} parent=11 // pred_check
          %p218 = pneg %p126
        $region26: #{tpu_custom_call.1} parent=11 // pred_check_branch
          %220 = sbr.rel (%p218) target = $region28
        $region27: #{tpu_custom_call.1} parent=11 // pred_region
          _
        $region28: #{tpu_custom_call.1} parent=11 // pred_fallthru
          _
        // Predicated region
        $region29: #{tpu_custom_call.1} parent=11 // pred_check
          %p221 = pneg %p147
        $region30: #{tpu_custom_call.1} parent=11 // pred_check_branch
          %223 = sbr.rel (%p221) target = $region32
        $region31: #{tpu_custom_call.1} parent=11 // pred_region
          _
        $region32: #{tpu_custom_call.1} parent=11 // pred_fallthru
          _
        // Predicated region
        $region33: #{tpu_custom_call.1} parent=11 // pred_check
          %p224 = pneg %p168
        $region34: #{tpu_custom_call.1} parent=11 // pred_check_branch
          %226 = sbr.rel (%p224) target = $region36
        $region35: #{tpu_custom_call.1} parent=11 // pred_region
          _
        $region36: #{tpu_custom_call.1} parent=11 // pred_fallthru
          _
      $region12: #{tpu_custom_call.1} parent=5 // pred_fallthru
        _
      %p227 = scmp.lt.s32.totalorder %s16, 2
      // Predicated region
      $region37: #{tpu_custom_call.1} parent=5 // pred_check
        %p228 = pneg %p227
      $region38: #{tpu_custom_call.1} parent=5 // pred_check_branch
        %230 = sbr.rel (%p228) target = $region40
      $region39: #{tpu_custom_call.1} parent=5 // pred_region
        // Predicated region
        $region41: #{tpu_custom_call.1} parent=39 // pred_check
          %p231 = pneg %p36
        $region42: #{tpu_custom_call.1} parent=39 // pred_check_branch
          %233 = sbr.rel (%p231) target = $region44
        $region43: #{tpu_custom_call.1} parent=39 // pred_region
          %s234 = smul.u32 2, %s16
          %s235 = ssub.s32 3, %s234
          %p236 = scmp.lt.s32.totalorder %s235, 2
          %s237 = scalar_select %p236, %s235, 2
          %s238 = smul.u32 16, %s237
          %p239 = scmp.lt.s32.totalorder %s234, 2
          %s240 = scalar_select %p239, %s234, 2
          %s241 = scalar_lea.vmem %s0, %s240
          %s242 = smul.u32 2, %s16
          %s243 = ssub.s32 3, %s242
          %p244 = scmp.lt.s32.totalorder %s243, 2
          %s245 = scalar_select %p244, %s243, 2
          %s246 = smul.u32 16, %s245
        $region44: #{tpu_custom_call.1} parent=39 // pred_fallthru
          _
      $region40: #{tpu_custom_call.1} parent=5 // pred_fallthru
        _
      %p247 = scmp.le.s32.totalorder 1, %s16
      %p248 = scmp.lt.s32.totalorder %s16, 3
      %p249 = pnand %p247, %p248
      %p250 = pneg %p249
      // Predicated region
      $region45: #{tpu_custom_call.1} parent=5 // pred_check
        _
      $region46: #{tpu_custom_call.1} parent=5 // pred_check_branch
        %252 = sbr.rel (%p249) target = $region48
      $region47: #{tpu_custom_call.1} parent=5 // pred_region
        %s253 = ssub.s32 %s16, 1
        %s254 = smul.u32 2, %s21
        %s255 = ssub.s32 3, %s254
        %p256 = scmp.lt.s32.totalorder %s255, 2
        %s257 = scalar_select %p256, %s255, 2
        %s258 = smul.u32 16, %s257
        %p259 = scmp.lt.s32.totalorder %s254, 2
        %s260 = scalar_select %p259, %s254, 2
        %s261 = scalar_lea.vmem %s0, %s260
        %p262 = pneg %p42
        %p263 = pneg %p39
        %p264 = pneg %p63
        %p265 = pneg %p60
        %p266 = pneg %p84
        %p267 = pneg %p81
        %p268 = pneg %p105
        %p269 = pneg %p102
        %p270 = pneg %p126
        %p271 = pneg %p123
        %p272 = pneg %p147
        %p273 = pneg %p144
        %p274 = pneg %p168
        %p275 = pneg %p165
        %p276 = pneg %p194
        %p277 = pneg %p191
        %s278 = sand.u32 %s181, 1
        %s279 = scalar_lea.sflag [#allocation3], %s278
        %s280 = sand.u32 %s181, 1
        %s281 = smul.addr %s280, 8
        %s282 = scalar_lea.vmem [#allocation2], %s281
        %s283 = smul.u32 2, %s21
        %s284 = ssub.s32 3, %s283
        %p285 = scmp.lt.s32.totalorder %s284, 2
        %s286 = scalar_select %p285, %s284, 2
        %s287 = smul.u32 16, %s286
        %p288 = scmp.lt.s32.totalorder %s283, 2
        %s289 = scalar_select %p288, %s283, 2
        %s290 = scalar_lea.vmem %s0, %s289
        %s291 = smul.u32 2, %s21
        %s292 = ssub.s32 3, %s291
        %p293 = scmp.lt.s32.totalorder %s292, 2
        %s294 = scalar_select %p293, %s292, 2
        %s295 = smul.u32 16, %s294
        %s296 = smul.u32 2, %s21
        %s297 = ssub.s32 3, %s296
        %p298 = scmp.lt.s32.totalorder %s297, 2
        %s299 = scalar_select %p298, %s297, 2
        %s300 = smul.u32 64, %s299
        %v301 = vld [vmem:[%s290] sm:$0x3]
        %v302 = vld [vmem:[%s1] sm:$0xff]
        %v303 = vld [vmem:[%s1 + $0x8] sm:$0xff]
        %v304 = vld [vmem:[%s1 + $0x10] sm:$0xff]
        %v305 = vld [vmem:[%s1 + $0x18] sm:$0xff]
        %307 = vset.pattern.permute.xlu0 0
        %308 = vperm.xlu0 %307, %v302
        %v309 = vpop.permute.xlu0 %308
        %312 = vset.pattern.permute.xlu0 0
        %313 = vperm.xlu0 %312, %v303
        %v314 = vpop.permute.xlu0 %313
        %317 = vset.pattern.permute.xlu0 0
        %318 = vperm.xlu0 %317, %v304
        %v319 = vpop.permute.xlu0 %318
        %322 = vset.pattern.permute.xlu0 0
        %323 = vperm.xlu0 %322, %v305
        %v324 = vpop.permute.xlu0 %323
        %v327 = vlaneseq
        %v328 = vshrl.u32 %v327, 7
        %v329 = vsub.s32 0, %v328
        %v330 = vrot.slane %v301, %v329
        %v331 = vlaneseq
        %v332 = vshrl.u32 %v331, 7
        %v333 = vsub.s32 1, %v332
        %v334 = vrot.slane %v301, %v333
        %v337 = vmul.f32 %v309, %v330
        %v338 = vmul.f32 %v309, %v334
        %v339 = vmul.f32 %v314, %v330
        %v340 = vmul.f32 %v314, %v334
        %v341 = vmul.f32 %v319, %v330
        %v342 = vmul.f32 %v319, %v334
        %v343 = vmul.f32 %v324, %v330
        %v344 = vmul.f32 %v324, %v334
        %v345 = vld [vmem:[%s2] sm:$0xff]
        %v346 = vld [vmem:[%s2 + $0x8] sm:$0xff]
        %v347 = vld [vmem:[%s2 + $0x10] sm:$0xff]
        %v348 = vld [vmem:[%s2 + $0x18] sm:$0xff]
        %350 = vset.pattern.permute.xlu0 0
        %351 = vperm.xlu0 %350, %v345
        %v352 = vpop.permute.xlu0 %351
        %355 = vset.pattern.permute.xlu0 0
        %356 = vperm.xlu0 %355, %v346
        %v357 = vpop.permute.xlu0 %356
        %360 = vset.pattern.permute.xlu0 0
        %361 = vperm.xlu0 %360, %v347
        %v362 = vpop.permute.xlu0 %361
        %365 = vset.pattern.permute.xlu0 0
        %366 = vperm.xlu0 %365, %v348
        %v367 = vpop.permute.xlu0 %366
        %v369 = vadd.f32 %v337, %v352
        %v370 = vadd.f32 %v338, %v352
        %v371 = vadd.f32 %v339, %v357
        %v372 = vadd.f32 %v340, %v357
        %v373 = vadd.f32 %v341, %v362
        %v374 = vadd.f32 %v342, %v362
        %v375 = vadd.f32 %v343, %v367
        %v376 = vadd.f32 %v344, %v367
        %v377 = vmax.f32 %v369, 0.0
        %v378 = vmax.f32 %v370, 0.0
        %v379 = vmax.f32 %v371, 0.0
        %v380 = vmax.f32 %v372, 0.0
        %v381 = vmax.f32 %v373, 0.0
        %v382 = vmax.f32 %v374, 0.0
        %v383 = vmax.f32 %v375, 0.0
        %v384 = vmax.f32 %v376, 0.0
        %v385 = vld [vmem:[%s3] sm:$0xff]
        %v386 = vld [vmem:[%s3 + $0x8] sm:$0xff]
        %v387 = vld [vmem:[%s3 + $0x10] sm:$0xff]
        %v388 = vld [vmem:[%s3 + $0x18] sm:$0xff]
        %v389 = vld [vmem:[%s4] sm:$0xff]
        %v390 = vld [vmem:[%s4 + $0x8] sm:$0xff]
        %v391 = vld [vmem:[%s4 + $0x10] sm:$0xff]
        %v392 = vld [vmem:[%s4 + $0x18] sm:$0xff]
        %394 = vset.pattern.permute.xlu0 0
        %395 = vperm.xlu0 %394, %v389
        %v396 = vpop.permute.xlu0 %395
        %399 = vset.pattern.permute.xlu0 0
        %400 = vperm.xlu0 %399, %v390
        %v401 = vpop.permute.xlu0 %400
        %404 = vset.pattern.permute.xlu0 0
        %405 = vperm.xlu0 %404, %v391
        %v406 = vpop.permute.xlu0 %405
        %409 = vset.pattern.permute.xlu0 0
        %410 = vperm.xlu0 %409, %v392
        %v411 = vpop.permute.xlu0 %410
        %vm413 = vcmask 261120
        %v415 = vsel %vm413, %v385, 0
        %v418 = vsel %vm413, %v386, 0
        %v421 = vsel %vm413, %v387, 0
        %v424 = vsel %vm413, %v388, 0
        %426 = vmatprep.subr.mxu0 %v378
        %427 = vmatpush1.msra.mxu0 %v377
        %428 = vmatprep.subr.mxu0 %v380
        %429 = vmatpush1.msra.mxu0 %v379
        %430 = vmatprep.subr.mxu0 %v382
        %431 = vmatpush1.msra.mxu0 %v381
        %432 = vmatprep.subr.mxu0 %v384
        %433 = vmatpush1.msra.mxu0 %v383
        %434 = vmatprep.subr.mxu0 0.0
        %435 = vmatpush1.msra.mxu0 0.0
        %436 = vmatprep.subr.mxu0 0.0
        %437 = vmatpush1.msra.mxu0 0.0
        %438 = vmatprep.subr.mxu0 0.0
        %439 = vmatpush1.msra.mxu0 0.0
        %440 = vmatprep.subr.mxu0 0.0
        %441 = vmatpush1.msra.mxu0 0.0
        %442 = vmatprep.subr.mxu0 0.0
        %443 = vmatpush1.msra.mxu0 0.0
        %444 = vmatprep.subr.mxu0 0.0
        %445 = vmatpush1.msra.mxu0 0.0
        %446 = vmatprep.subr.mxu0 0.0
        %447 = vmatpush1.msra.mxu0 0.0
        %448 = vmatprep.subr.mxu0 0.0
        %449 = vmatpush1.msra.mxu0 0.0
        %450 = vmatprep.subr.mxu0 0.0
        %451 = vmatpush1.msra.mxu0 0.0
        %452 = vmatprep.subr.mxu0 0.0
        %453 = vmatpush1.msra.mxu0 0.0
        %454 = vmatprep.subr.mxu0 0.0
        %455 = vmatpush1.msra.mxu0 0.0
        %456 = vmatprep.subr.mxu0 0.0
        %457 = vmatpush1.msra.mxu0 0.0
        %458 = vmatprep.subr.mxu0 0.0
        %459 = vmatpush1.msra.mxu0 0.0
        %460 = vmatprep.subr.mxu0 0.0
        %461 = vmatpush1.msra.mxu0 0.0
        %462 = vmatprep.subr.mxu0 0.0
        %463 = vmatpush1.msra.mxu0 0.0
        %464 = vmatprep.subr.mxu0 0.0
        %465 = vmatpush1.msra.mxu0 0.0
        %466 = vmatprep.subr.mxu0 0.0
        %467 = vmatpush1.msra.mxu0 0.0
        %468 = vmatprep.subr.mxu0 0.0
        %469 = vmatpush1.msra.mxu0 0.0
        %470 = vmatprep.subr.mxu0 0.0
        %471 = vmatpush1.msra.mxu0 0.0
        %472 = vmatprep.subr.mxu0 0.0
        %473 = vmatpush1.msra.mxu0 0.0
        %474 = vmatprep.subr.mxu0 0.0
        %475 = vmatpush1.msra.mxu0 0.0
        %476 = vmatprep.subr.mxu0 0.0
        %477 = vmatpush1.msra.mxu0 0.0
        %478 = vmatprep.subr.mxu0 0.0
        %479 = vmatpush1.msra.mxu0 0.0
        %480 = vmatprep.subr.mxu0 0.0
        %481 = vmatpush1.msra.mxu0 0.0
        %482 = vmatprep.subr.mxu0 0.0
        %483 = vmatpush1.msra.mxu0 0.0
        %484 = vmatprep.subr.mxu0 0.0
        %485 = vmatpush1.msra.mxu0 0.0
        %486 = vmatprep.subr.mxu0 0.0
        %487 = vmatpush1.msra.mxu0 0.0
        %488 = vmatprep.subr.mxu0 0.0
        %489 = vmatpush1.msra.mxu0 0.0
        %490 = vmatprep.mubr.f32.mxu0 0.0
        %491 = vmatmul.mubr.f32.gmra.mrb[0].mxu0 %v415
        %v492 = vpop.f32.mrb[0].mxu0
        %v493 = vadd.f32 %v396, %v492
        %v494 = vpop.f32.mrb[0].mxu0
        %v495 = vadd.f32 %v396, %v494
        %496 = vmatprep.mubr.f32.mxu0 0.0
        %497 = vmatmul.mubr.f32.gmra.mrb[0].mxu0 %v418
        %v498 = vpop.f32.mrb[0].mxu0
        %v499 = vadd.f32 %v401, %v498
        %v500 = vpop.f32.mrb[0].mxu0
        %v501 = vadd.f32 %v401, %v500
        %502 = vmatprep.mubr.f32.mxu0 0.0
        %503 = vmatmul.mubr.f32.gmra.mrb[0].mxu0 %v421
        %v504 = vpop.f32.mrb[0].mxu0
        %v505 = vadd.f32 %v406, %v504
        %v506 = vpop.f32.mrb[0].mxu0
        %v507 = vadd.f32 %v406, %v506
        %508 = vmatprep.mubr.f32.mxu0 0.0
        %509 = vmatmul.mubr.f32.gmra.mrb[0].mxu0 %v424
        %v510 = vpop.f32.mrb[0].mxu0
        %v511 = vadd.f32 %v411, %v510
        %v512 = vpop.f32.mrb[0].mxu0
        %v513 = vadd.f32 %v411, %v512
        %514 = vdwg.mxu0
        %v515 = vmax.f32 %v493, 0.0
        %v516 = vmax.f32 %v495, 0.0
        %v517 = vmax.f32 %v499, 0.0
        %v518 = vmax.f32 %v501, 0.0
        %v519 = vmax.f32 %v505, 0.0
        %v520 = vmax.f32 %v507, 0.0
        %v521 = vmax.f32 %v511, 0.0
        %v522 = vmax.f32 %v513, 0.0
        %v523 = vld [vmem:[%s5] sm:$0xf]
        %v524 = vld [vmem:[%s6] sm:$0xf]
        %526 = vset.pattern.permute.xlu0 0
        %527 = vperm.xlu0 %526, %v524
        %v528 = vpop.permute.xlu0 %527
        %v531 = vsel %vm413, %v523, 0
        %533 = vmatprep.subr.mxu0 %v516
        %534 = vmatpush1.msra.mxu0 %v515
        %535 = vmatprep.subr.mxu0 %v518
        %536 = vmatpush1.msra.mxu0 %v517
        %537 = vmatprep.subr.mxu0 %v520
        %538 = vmatpush1.msra.mxu0 %v519
        %539 = vmatprep.subr.mxu0 %v522
        %540 = vmatpush1.msra.mxu0 %v521
        %541 = vmatprep.subr.mxu0 0.0
        %542 = vmatpush1.msra.mxu0 0.0
        %543 = vmatprep.subr.mxu0 0.0
        %544 = vmatpush1.msra.mxu0 0.0
        %545 = vmatprep.subr.mxu0 0.0
        %546 = vmatpush1.msra.mxu0 0.0
        %547 = vmatprep.subr.mxu0 0.0
        %548 = vmatpush1.msra.mxu0 0.0
        %549 = vmatprep.subr.mxu0 0.0
        %550 = vmatpush1.msra.mxu0 0.0
        %551 = vmatprep.subr.mxu0 0.0
        %552 = vmatpush1.msra.mxu0 0.0
        %553 = vmatprep.subr.mxu0 0.0
        %554 = vmatpush1.msra.mxu0 0.0
        %555 = vmatprep.subr.mxu0 0.0
        %556 = vmatpush1.msra.mxu0 0.0
        %557 = vmatprep.subr.mxu0 0.0
        %558 = vmatpush1.msra.mxu0 0.0
        %559 = vmatprep.subr.mxu0 0.0
        %560 = vmatpush1.msra.mxu0 0.0
        %561 = vmatprep.subr.mxu0 0.0
        %562 = vmatpush1.msra.mxu0 0.0
        %563 = vmatprep.subr.mxu0 0.0
        %564 = vmatpush1.msra.mxu0 0.0
        %565 = vmatprep.subr.mxu0 0.0
        %566 = vmatpush1.msra.mxu0 0.0
        %567 = vmatprep.subr.mxu0 0.0
        %568 = vmatpush1.msra.mxu0 0.0
        %569 = vmatprep.subr.mxu0 0.0
        %570 = vmatpush1.msra.mxu0 0.0
        %571 = vmatprep.subr.mxu0 0.0
        %572 = vmatpush1.msra.mxu0 0.0
        %573 = vmatprep.subr.mxu0 0.0
        %574 = vmatpush1.msra.mxu0 0.0
        %575 = vmatprep.subr.mxu0 0.0
        %576 = vmatpush1.msra.mxu0 0.0
        %577 = vmatprep.subr.mxu0 0.0
        %578 = vmatpush1.msra.mxu0 0.0
        %579 = vmatprep.subr.mxu0 0.0
        %580 = vmatpush1.msra.mxu0 0.0
        %581 = vmatprep.subr.mxu0 0.0
        %582 = vmatpush1.msra.mxu0 0.0
        %583 = vmatprep.subr.mxu0 0.0
        %584 = vmatpush1.msra.mxu0 0.0
        %585 = vmatprep.subr.mxu0 0.0
        %586 = vmatpush1.msra.mxu0 0.0
        %587 = vmatprep.subr.mxu0 0.0
        %588 = vmatpush1.msra.mxu0 0.0
        %589 = vmatprep.subr.mxu0 0.0
        %590 = vmatpush1.msra.mxu0 0.0
        %591 = vmatprep.subr.mxu0 0.0
        %592 = vmatpush1.msra.mxu0 0.0
        %593 = vmatprep.subr.mxu0 0.0
        %594 = vmatpush1.msra.mxu0 0.0
        %595 = vmatprep.subr.mxu0 0.0
        %596 = vmatpush1.msra.mxu0 0.0
        %597 = vmatprep.mubr.f32.mxu0 0.0
        %598 = vmatmul.mubr.f32.gmra.mrb[0].mxu0 %v531
        %v599 = vpop.f32.mrb[0].mxu0
        %v600 = vadd.f32 %v528, %v599
        %v601 = vpop.f32.mrb[0].mxu0
        %v602 = vadd.f32 %v528, %v601
        %603 = vdwg.mxu0
        %v606 = vcombine.low %v600, %v602
        %608 = vst [vmem:[%s282] sm:$0xff] %v606
        %s609 = sand.u32 %s181, 1
        %s610 = scalar_lea.sflag [#allocation3], %s609
        %s611 = sand.u32 %s181, 1
        %s612 = smul.addr %s611, 8
        %s613 = scalar_lea.vmem [#allocation2], %s612
        // Predicated region
        $region49: #{tpu_custom_call.1} parent=47 // pred_check
          %p614 = pneg %p191
        $region50: #{tpu_custom_call.1} parent=47 // pred_check_branch
          %616 = sbr.rel (%p614) target = $region52
        $region51: #{tpu_custom_call.1} parent=47 // pred_region
          %s617 = smul.u32 2, %s21
          %s618 = ssub.s32 3, %s617
          %p619 = scmp.lt.s32.totalorder %s618, 2
          %s620 = scalar_select %p619, %s618, 2
          %s621 = smul.u32 64, %s620
          %s623 = ssub.s32 128, %s621
          %624 = vsyncadd %s610, %s623
          %p625 = scmp.ne.s32.totalorder 0, %s621
          %s626 = smul.addr %s617, 64
          %s627 = scalar_lea.hbm %s7, %s626
          %s628 = smul.u32 %s620, 4
          %s629 = sshll.u32 %s628, 4
          %s630 = sshll.u32 %s613, 4
          %s631 = int_to_ptr.vmem [resolvable:$true] %s630
          %633 = dma.vmem_to_hbm [thread:$0]  (%p625), %s631, %s629, %s627, %s610
        $region52: #{tpu_custom_call.1} parent=47 // pred_fallthru
          _
      $region48: #{tpu_custom_call.1} parent=5 // pred_fallthru
        _
      %p634 = scmp.le.s32.totalorder 2, %s16
      // Predicated region
      $region53: #{tpu_custom_call.1} parent=5 // pred_check
        %p635 = pneg %p634
      $region54: #{tpu_custom_call.1} parent=5 // pred_check_branch
        %637 = sbr.rel (%p635) target = $region56
      $region55: #{tpu_custom_call.1} parent=5 // pred_region
        %s638 = ssub.s32 %s16, 2
        // Predicated region
        $region57: #{tpu_custom_call.1} parent=55 // pred_check
          %p639 = pneg %p197
        $region58: #{tpu_custom_call.1} parent=55 // pred_check_branch
          %641 = sbr.rel (%p639) target = $region60
        $region59: #{tpu_custom_call.1} parent=55 // pred_region
          %s642 = sand.u32 %s182, 1
          %s643 = scalar_lea.sflag [#allocation3], %s642
          %s644 = sand.u32 %s182, 1
          %s645 = smul.addr %s644, 8
          %s646 = scalar_lea.vmem [#allocation2], %s645
          %647 = dma.done %s643, 128
        $region60: #{tpu_custom_call.1} parent=55 // pred_fallthru
          _
      $region56: #{tpu_custom_call.1} parent=5 // pred_fallthru
        _
    $region6: #{tpu_custom_call.1} parent=1 // loop_footer
      %s20 = sadd.s32 1, %s16
    $region7: #{tpu_custom_call.1} parent=1 // loop_footer_branch
      %15 = sbr.rel target = $region3
    $region8: #{tpu_custom_call.1} parent=1 // loop_exit
      _
    %648 = vsyncpa [#allocation3], 1
    %s649 = scalar_lea.sflag [#allocation3], 1
    %650 = vsyncpa %s649, 1

</llo_original>
